<compile_context>
chip_gen: v5e
topology: v5e:2x2
jax: 0.10.0
libtpu: 0.0.40
codegen_flags: <defaults>
</compile_context>

<pallas_src>
import functools

import jax
import jax.numpy as jnp
from jax.experimental import pallas as pl
from jax.experimental.pallas import tpu as pltpu


# ----------------------------------------------------------------------------
# Pallas kernels
# ----------------------------------------------------------------------------
def _matmul_bias_relu_kernel(x_ref, w_ref, b_ref, o_ref):
    """o = relu(x @ w + b).  x:(M,K) bf16, w:(K,C) bf16, b:(1,C) f32."""
    acc = jnp.dot(x_ref[...], w_ref[...], preferred_element_type=jnp.float32)
    o_ref[...] = jnp.maximum(acc + b_ref[...], 0.0).astype(o_ref.dtype)


def _tail_kernel(cols_ref, w3_ref, b3_ref, w4_ref, b4_ref, w5_ref, b5_ref,
                 w6_ref, o_ref, *, n_batch, hw):
    """Fused layer3 + layer4 + layer5 + conv6 + GlobalAvgPool + Sigmoid.

    cols_ref : (n_batch*hw, 9*32) bf16  -- im2col of layer2's output
    w*_ref   : bf16 weight matrices (BN scale folded in), b*_ref : (1,128) f32
    o_ref    : (n_batch, 128) f32       -- only the first 3 channels are valid
    """
    def mm(x, w_ref):
        return jnp.dot(x.astype(jnp.bfloat16), w_ref[...],
                       preferred_element_type=jnp.float32)

    # layer3 (3x3 s2 conv as matmul on im2col patches) + BN + ReLU
    h = jnp.dot(cols_ref[...], w3_ref[...], preferred_element_type=jnp.float32)
    h = jnp.maximum(h + b3_ref[...], 0.0)
    # layer4 (1x1 conv) + BN + ReLU
    h = jnp.maximum(mm(h, w4_ref) + b4_ref[...], 0.0)
    # layer5 (1x1 conv, 128->3 padded to 128) + BN + ReLU
    h = jnp.maximum(mm(h, w5_ref) + b5_ref[...], 0.0)
    # conv6 (1x1 conv, no BN / ReLU / bias)
    h = mm(h, w6_ref)                              # (n_batch*hw, 128) f32

    # AdaptiveAvgPool2d(1) + Sigmoid (rows are ordered (batch, spatial))
    inv_hw = 1.0 / hw
    for n in range(n_batch):                       # tiny static unroll
        s = jnp.sum(h[n * hw:(n + 1) * hw, :], axis=0, keepdims=True) * inv_hw
        o_ref[n:n + 1, :] = (1.0 / (1.0 + jnp.exp(-s))).astype(o_ref.dtype)


# ----------------------------------------------------------------------------
# pallas_call wrappers
# ----------------------------------------------------------------------------
def matmul_bias_relu(cols, w, b):
    """cols:(M,K) bf16, w:(K,C) bf16, b:(1,C) f32 -> (M,C) bf16."""
    M, K = cols.shape
    C = w.shape[1]
    return pl.pallas_call(
        _matmul_bias_relu_kernel,
        out_shape=jax.ShapeDtypeStruct((M, C), jnp.bfloat16),
        grid=(1,),
        in_specs=[
            pl.BlockSpec((M, K), lambda i: (0, 0)),
            pl.BlockSpec((K, C), lambda i: (0, 0)),
            pl.BlockSpec((1, C), lambda i: (0, 0)),
        ],
        out_specs=pl.BlockSpec((M, C), lambda i: (0, 0)),
        compiler_params=pltpu.CompilerParams(
            dimension_semantics=("arbitrary",)),
        cost_estimate=pl.CostEstimate(
            flops=2 * M * K * C,
            transcendentals=0,
            bytes_accessed=M * K * 2 + K * C * 2 + C * 4 + M * C * 2),
    )(cols, w, b)


def fused_tail(cols, params, n_batch, hw):
    """Fused layer3..conv6 + GAP + sigmoid.  Returns (n_batch, 128) f32."""
    M, K = cols.shape
    C = 128
    args = (cols, params["w3"], params["b3"], params["w4"], params["b4"],
            params["w5"], params["b5"], params["w6"])

    def full_spec(a):
        return pl.BlockSpec(a.shape, lambda i: (0,) * a.ndim)

    kernel = functools.partial(_tail_kernel, n_batch=n_batch, hw=hw)
    flops = 2 * M * (K * C + 3 * C * C)
    bytes_accessed = sum(int(a.size) * a.dtype.itemsize for a in args)
    bytes_accessed += n_batch * C * 4
    return pl.pallas_call(
        kernel,
        out_shape=jax.ShapeDtypeStruct((n_batch, C), jnp.float32),
        grid=(1,),
        in_specs=[full_spec(a) for a in args],
        out_specs=pl.BlockSpec((n_batch, C), lambda i: (0, 0)),
        compiler_params=pltpu.CompilerParams(
            dimension_semantics=("arbitrary",)),
        cost_estimate=pl.CostEstimate(
            flops=flops, transcendentals=n_batch * C,
            bytes_accessed=bytes_accessed),
    )(*args)


# ----------------------------------------------------------------------------
# im2col glue (plain JAX; tiny gathers / reshapes only)
# ----------------------------------------------------------------------------
def im2col(x_nhwc, k, s, p):
    """Returns (cols:(N*Ho*Wo, k*k*C), Ho, Wo).  Column order = (kh, kw, Cin)."""
    N, H, W, C = x_nhwc.shape
    if k == 1 and s == 1 and p == 0:
        return x_nhwc.reshape(N * H * W, C), H, W
    xp = jnp.pad(x_nhwc, ((0, 0), (p, p), (p, p), (0, 0)))
    Ho = (H + 2 * p - k) // s + 1
    Wo = (W + 2 * p - k) // s + 1
    patches = []
    for di in range(k):
        for dj in range(k):
            patches.append(xp[:, di:di + s * Ho:s, dj:dj + s * Wo:s, :])
    cols = jnp.concatenate(patches, axis=-1)          # (N, Ho, Wo, k*k*C)
    return cols.reshape(N * Ho * Wo, k * k * C), Ho, Wo


# ----------------------------------------------------------------------------
# Parameter construction (deterministic, synthetic; BN folded into weights)
# ----------------------------------------------------------------------------
def init_params(key):
    """Weights stored as (kh*kw*Cin, Cout) bf16 with the BN scale folded in —
    equivalent to the PyTorch (Cout, Cin, kh, kw) weight transposed to
    (kh, kw, Cin, Cout) and flattened (matching im2col column order)."""
    eps = 1e-5

    def conv_bn(k_layer, cin, cout, k, pad_out=None):
        kw_, kg, kb = jax.random.split(k_layer, 3)
        fan_in = cin * k * k
        w = jax.random.normal(kw_, (fan_in, cout), jnp.float32) * jnp.sqrt(
            2.0 / fan_in)
        gamma = 1.0 + 0.1 * jax.random.normal(kg, (cout,), jnp.float32)
        beta = 0.1 * jax.random.normal(kb, (cout,), jnp.float32)
        scale = gamma / jnp.sqrt(1.0 + eps)      # running_var = 1
        bias = beta                              # running_mean = 0
        w = w * scale[None, :]                   # fold BN scale into weights
        if pad_out is not None and pad_out > cout:
            w = jnp.pad(w, ((0, 0), (0, pad_out - cout)))
            bias = jnp.pad(bias, (0, pad_out - cout))
        return w.astype(jnp.bfloat16), bias.reshape(1, -1).astype(jnp.float32)

    keys = jax.random.split(key, 6)
    p = {}
    p["w1"], p["b1"] = conv_bn(keys[0], 3, 8, 3)
    p["w2"], p["b2"] = conv_bn(keys[1], 8, 32, 3)
    p["w3"], p["b3"] = conv_bn(keys[2], 32, 128, 3)
    p["w4"], p["b4"] = conv_bn(keys[3], 128, 128, 1)
    # layer5: 128 -> 3, padded to 128 output channels (zeros) so the fused tail
    # stays lane-dense; padded channels stay exactly 0 after ReLU.
    p["w5"], p["b5"] = conv_bn(keys[4], 128, 3, 1, pad_out=128)
    # conv6: 1x1, 3 -> 3, no BN / ReLU / bias.  Pre-padded to (128, 128);
    # extra rows multiply exact zeros, extra output columns are sliced off.
    w6 = jax.random.normal(keys[5], (3, 3), jnp.float32) * jnp.sqrt(2.0 / 3)
    p["w6"] = jnp.pad(w6, ((0, 125), (0, 125))).astype(jnp.bfloat16)
    return p


# ----------------------------------------------------------------------------
# Full forward pass
# ----------------------------------------------------------------------------
def classification_forward(x_nchw, params):
    x = jnp.transpose(x_nchw, (0, 2, 3, 1))            # NCHW -> NHWC
    N = x.shape[0]

    # layer1: conv3x3 s2 p1 (3->8) + BN + ReLU
    cols, Ho, Wo = im2col(x.astype(jnp.bfloat16), 3, 2, 1)
    x = matmul_bias_relu(cols, params["w1"], params["b1"]).reshape(N, Ho, Wo, 8)

    # layer2: conv3x3 s2 p1 (8->32) + BN + ReLU
    cols, Ho, Wo = im2col(x, 3, 2, 1)
    x = matmul_bias_relu(cols, params["w2"], params["b2"]).reshape(N, Ho, Wo, 32)

    # layer3..conv6 + GAP + Sigmoid, fused into one kernel
    cols, Ho, Wo = im2col(x, 3, 2, 1)                   # (N*Ho*Wo, 288)
    out = fused_tail(cols, params, n_batch=N, hw=Ho * Wo)   # (N, 128) f32
    out = out[:, :3]                                    # valid channels
    return out[:, :, None, None]                        # (N, 3, 1, 1) like PyTorch


if __name__ == "__main__":
    key = jax.random.PRNGKey(0)
    k_in, k_par = jax.random.split(key)
    x = jax.random.normal(k_in, (2, 3, 16, 16), jnp.float32)   # NCHW like PyTorch
    params = init_params(k_par)

    out = jax.jit(classification_forward)(x, params)
    out = jax.block_until_ready(out)
    assert out.shape == (2, 3, 1, 1), out.shape
    assert bool(jnp.all(jnp.isfinite(out)))
    assert bool(jnp.all((out >= 0.0) & (out <= 1.0)))          # sigmoid range
    print("KERNEL_OK")
</pallas_src>

<mosaic_0001>
module attributes {stable_mosaic.version = 11 : i64} {
  func.func @_matmul_bias_relu_kernel(%arg0: i32, %arg1: memref<128x27xbf16, #tpu.memory_space<vmem>>, %arg2: memref<27x8xbf16, #tpu.memory_space<vmem>>, %arg3: memref<1x8xf32, #tpu.memory_space<vmem>>, %arg4: memref<128x8xbf16, #tpu.memory_space<vmem>>) attributes {dimension_semantics = [#tpu.dimension_semantics<arbitrary>], iteration_bounds = array<i64: 1>, scalar_prefetch = 0 : i64, scratch_operands = 0 : i64, tpu.core_type = #tpu.core_type<tc>, window_params = [{pipeline_mode = #tpu.pipeline_mode<synchronous>, transform_indices = @transform_0, window_bounds = array<i64: 128, 27>}, {pipeline_mode = #tpu.pipeline_mode<synchronous>, transform_indices = @transform_1, window_bounds = array<i64: 27, 8>}, {pipeline_mode = #tpu.pipeline_mode<synchronous>, transform_indices = @transform_2, window_bounds = array<i64: 1, 8>}, {pipeline_mode = #tpu.pipeline_mode<synchronous>, transform_indices = @transform_3, window_bounds = array<i64: 128, 8>}]} {
    %c0 = arith.constant 0 : index
    %c0_0 = arith.constant 0 : index
    %0 = vector.load %arg1[%c0, %c0_0] : memref<128x27xbf16, #tpu.memory_space<vmem>>, vector<128x27xbf16>
    %c0_1 = arith.constant 0 : index
    %c0_2 = arith.constant 0 : index
    %1 = vector.load %arg2[%c0_1, %c0_2] : memref<27x8xbf16, #tpu.memory_space<vmem>>, vector<27x8xbf16>
    %cst = arith.constant dense<0.000000e+00> : vector<128x8xf32>
    %2 = tpu.matmul %0, %1, %cst {dimension_numbers = #tpu.dot_dimension_numbers<[1], [0], [0], [1], [0, 0, 1, 1], [], []>} : vector<128x27xbf16>, vector<27x8xbf16>, vector<128x8xf32> -> vector<128x8xf32>
    %c0_3 = arith.constant 0 : index
    %c0_4 = arith.constant 0 : index
    %3 = vector.load %arg3[%c0_3, %c0_4] : memref<1x8xf32, #tpu.memory_space<vmem>>, vector<1x8xf32>
    %4 = vector.broadcast %3 : vector<1x8xf32> to vector<128x8xf32>
    %5 = arith.addf %2, %4 : vector<128x8xf32>
    %cst_5 = arith.constant 0.000000e+00 : f32
    %6 = vector.broadcast %cst_5 : f32 to vector<128x8xf32>
    %7 = arith.maximumf %5, %6 : vector<128x8xf32>
    %8 = arith.truncf %7 : vector<128x8xf32> to vector<128x8xbf16>
    %c0_6 = arith.constant 0 : index
    %c0_7 = arith.constant 0 : index
    %9 = vector.load %arg4[%c0_6, %c0_7] : memref<128x8xbf16, #tpu.memory_space<vmem>>, vector<128x8xbf16>
    tpu.vector_store %arg4[%c0_6, %c0_7], %8 {strides = array<i32>} : memref<128x8xbf16, #tpu.memory_space<vmem>>, vector<128x8xbf16>,
    return
  }
  func.func @transform_0(%arg0: i32) -> (i32, i32) {
    %c0_i32 = arith.constant 0 : i32
    %c0_i32_0 = arith.constant 0 : i32
    %c0_i32_1 = arith.constant 0 : i32
    return %c0_i32, %c0_i32_0 : i32, i32
  }
  func.func @transform_1(%arg0: i32) -> (i32, i32) {
    %c0_i32 = arith.constant 0 : i32
    %c0_i32_0 = arith.constant 0 : i32
    %c0_i32_1 = arith.constant 0 : i32
    return %c0_i32, %c0_i32_0 : i32, i32
  }
  func.func @transform_2(%arg0: i32) -> (i32, i32) {
    %c0_i32 = arith.constant 0 : i32
    %c0_i32_0 = arith.constant 0 : i32
    %c0_i32_1 = arith.constant 0 : i32
    return %c0_i32, %c0_i32_0 : i32, i32
  }
  func.func @transform_3(%arg0: i32) -> (i32, i32) {
    %c0_i32 = arith.constant 0 : i32
    %c0_i32_0 = arith.constant 0 : i32
    %c0_i32_1 = arith.constant 0 : i32
    return %c0_i32, %c0_i32_0 : i32, i32
  }
}

module attributes {stable_mosaic.version = 11 : i64} {
  func.func @_matmul_bias_relu_kernel(%arg0: i32, %arg1: memref<32x72xbf16, #tpu.memory_space<vmem>>, %arg2: memref<72x32xbf16, #tpu.memory_space<vmem>>, %arg3: memref<1x32xf32, #tpu.memory_space<vmem>>, %arg4: memref<32x32xbf16, #tpu.memory_space<vmem>>) attributes {dimension_semantics = [#tpu.dimension_semantics<arbitrary>], iteration_bounds = array<i64: 1>, scalar_prefetch = 0 : i64, scratch_operands = 0 : i64, tpu.core_type = #tpu.core_type<tc>, window_params = [{pipeline_mode = #tpu.pipeline_mode<synchronous>, transform_indices = @transform_0, window_bounds = array<i64: 32, 72>}, {pipeline_mode = #tpu.pipeline_mode<synchronous>, transform_indices = @transform_1, window_bounds = array<i64: 72, 32>}, {pipeline_mode = #tpu.pipeline_mode<synchronous>, transform_indices = @transform_2, window_bounds = array<i64: 1, 32>}, {pipeline_mode = #tpu.pipeline_mode<synchronous>, transform_indices = @transform_3, window_bounds = array<i64: 32, 32>}]} {
    %c0 = arith.constant 0 : index
    %c0_0 = arith.constant 0 : index
    %0 = vector.load %arg1[%c0, %c0_0] : memref<32x72xbf16, #tpu.memory_space<vmem>>, vector<32x72xbf16>
    %c0_1 = arith.constant 0 : index
    %c0_2 = arith.constant 0 : index
    %1 = vector.load %arg2[%c0_1, %c0_2] : memref<72x32xbf16, #tpu.memory_space<vmem>>, vector<72x32xbf16>
    %cst = arith.constant dense<0.000000e+00> : vector<32x32xf32>
    %2 = tpu.matmul %0, %1, %cst {dimension_numbers = #tpu.dot_dimension_numbers<[1], [0], [0], [1], [0, 0, 1, 1], [], []>} : vector<32x72xbf16>, vector<72x32xbf16>, vector<32x32xf32> -> vector<32x32xf32>
    %c0_3 = arith.constant 0 : index
    %c0_4 = arith.constant 0 : index
    %3 = vector.load %arg3[%c0_3, %c0_4] : memref<1x32xf32, #tpu.memory_space<vmem>>, vector<1x32xf32>
    %4 = vector.broadcast %3 : vector<1x32xf32> to vector<32x32xf32>
    %5 = arith.addf %2, %4 : vector<32x32xf32>
    %cst_5 = arith.constant 0.000000e+00 : f32
    %6 = vector.broadcast %cst_5 : f32 to vector<32x32xf32>
    %7 = arith.maximumf %5, %6 : vector<32x32xf32>
    %8 = arith.truncf %7 : vector<32x32xf32> to vector<32x32xbf16>
    %c0_6 = arith.constant 0 : index
    %c0_7 = arith.constant 0 : index
    %9 = vector.load %arg4[%c0_6, %c0_7] : memref<32x32xbf16, #tpu.memory_space<vmem>>, vector<32x32xbf16>
    tpu.vector_store %arg4[%c0_6, %c0_7], %8 {strides = array<i32>} : memref<32x32xbf16, #tpu.memory_space<vmem>>, vector<32x32xbf16>,
    return
  }
  func.func @transform_0(%arg0: i32) -> (i32, i32) {
    %c0_i32 = arith.constant 0 : i32
    %c0_i32_0 = arith.constant 0 : i32
    %c0_i32_1 = arith.constant 0 : i32
    return %c0_i32, %c0_i32_0 : i32, i32
  }
  func.func @transform_1(%arg0: i32) -> (i32, i32) {
    %c0_i32 = arith.constant 0 : i32
    %c0_i32_0 = arith.constant 0 : i32
    %c0_i32_1 = arith.constant 0 : i32
    return %c0_i32, %c0_i32_0 : i32, i32
  }
  func.func @transform_2(%arg0: i32) -> (i32, i32) {
    %c0_i32 = arith.constant 0 : i32
    %c0_i32_0 = arith.constant 0 : i32
    %c0_i32_1 = arith.constant 0 : i32
    return %c0_i32, %c0_i32_0 : i32, i32
  }
  func.func @transform_3(%arg0: i32) -> (i32, i32) {
    %c0_i32 = arith.constant 0 : i32
    %c0_i32_0 = arith.constant 0 : i32
    %c0_i32_1 = arith.constant 0 : i32
    return %c0_i32, %c0_i32_0 : i32, i32
  }
}

module attributes {stable_mosaic.version = 11 : i64} {
  func.func @_tail_kernel(%arg0: i32, %arg1: memref<8x288xbf16, #tpu.memory_space<vmem>>, %arg2: memref<288x128xbf16, #tpu.memory_space<vmem>>, %arg3: memref<1x128xf32, #tpu.memory_space<vmem>>, %arg4: memref<128x128xbf16, #tpu.memory_space<vmem>>, %arg5: memref<1x128xf32, #tpu.memory_space<vmem>>, %arg6: memref<128x128xbf16, #tpu.memory_space<vmem>>, %arg7: memref<1x128xf32, #tpu.memory_space<vmem>>, %arg8: memref<128x128xbf16, #tpu.memory_space<vmem>>, %arg9: memref<2x128xf32, #tpu.memory_space<vmem>>) attributes {dimension_semantics = [#tpu.dimension_semantics<arbitrary>], iteration_bounds = array<i64: 1>, scalar_prefetch = 0 : i64, scratch_operands = 0 : i64, tpu.core_type = #tpu.core_type<tc>, window_params = [{pipeline_mode = #tpu.pipeline_mode<synchronous>, transform_indices = @transform_0, window_bounds = array<i64: 8, 288>}, {pipeline_mode = #tpu.pipeline_mode<synchronous>, transform_indices = @transform_1, window_bounds = array<i64: 288, 128>}, {pipeline_mode = #tpu.pipeline_mode<synchronous>, transform_indices = @transform_2, window_bounds = array<i64: 1, 128>}, {pipeline_mode = #tpu.pipeline_mode<synchronous>, transform_indices = @transform_3, window_bounds = array<i64: 128, 128>}, {pipeline_mode = #tpu.pipeline_mode<synchronous>, transform_indices = @transform_4, window_bounds = array<i64: 1, 128>}, {pipeline_mode = #tpu.pipeline_mode<synchronous>, transform_indices = @transform_5, window_bounds = array<i64: 128, 128>}, {pipeline_mode = #tpu.pipeline_mode<synchronous>, transform_indices = @transform_6, window_bounds = array<i64: 1, 128>}, {pipeline_mode = #tpu.pipeline_mode<synchronous>, transform_indices = @transform_7, window_bounds = array<i64: 128, 128>}, {pipeline_mode = #tpu.pipeline_mode<synchronous>, transform_indices = @transform_8, window_bounds = array<i64: 2, 128>}]} {
    %c0 = arith.constant 0 : index
    %c0_0 = arith.constant 0 : index
    %0 = vector.load %arg1[%c0, %c0_0] : memref<8x288xbf16, #tpu.memory_space<vmem>>, vector<8x288xbf16>
    %c0_1 = arith.constant 0 : index
    %c0_2 = arith.constant 0 : index
    %1 = vector.load %arg2[%c0_1, %c0_2] : memref<288x128xbf16, #tpu.memory_space<vmem>>, vector<288x128xbf16>
    %cst = arith.constant dense<0.000000e+00> : vector<8x128xf32>
    %2 = tpu.matmul %0, %1, %cst {dimension_numbers = #tpu.dot_dimension_numbers<[1], [0], [0], [1], [0, 0, 1, 1], [], []>} : vector<8x288xbf16>, vector<288x128xbf16>, vector<8x128xf32> -> vector<8x128xf32>
    %c0_3 = arith.constant 0 : index
    %c0_4 = arith.constant 0 : index
    %3 = vector.load %arg3[%c0_3, %c0_4] : memref<1x128xf32, #tpu.memory_space<vmem>>, vector<1x128xf32>
    %4 = vector.broadcast %3 : vector<1x128xf32> to vector<8x128xf32>
    %5 = arith.addf %2, %4 : vector<8x128xf32>
    %cst_5 = arith.constant 0.000000e+00 : f32
    %6 = vector.broadcast %cst_5 : f32 to vector<8x128xf32>
    %7 = arith.maximumf %5, %6 : vector<8x128xf32>
    %8 = arith.truncf %7 : vector<8x128xf32> to vector<8x128xbf16>
    %c0_6 = arith.constant 0 : index
    %c0_7 = arith.constant 0 : index
    %9 = vector.load %arg4[%c0_6, %c0_7] : memref<128x128xbf16, #tpu.memory_space<vmem>>, vector<128x128xbf16>
    %cst_8 = arith.constant dense<0.000000e+00> : vector<8x128xf32>
    %10 = tpu.matmul %8, %9, %cst_8 {dimension_numbers = #tpu.dot_dimension_numbers<[1], [0], [0], [1], [0, 0, 1, 1], [], []>} : vector<8x128xbf16>, vector<128x128xbf16>, vector<8x128xf32> -> vector<8x128xf32>
    %c0_9 = arith.constant 0 : index
    %c0_10 = arith.constant 0 : index
    %11 = vector.load %arg5[%c0_9, %c0_10] : memref<1x128xf32, #tpu.memory_space<vmem>>, vector<1x128xf32>
    %12 = vector.broadcast %11 : vector<1x128xf32> to vector<8x128xf32>
    %13 = arith.addf %10, %12 : vector<8x128xf32>
    %cst_11 = arith.constant 0.000000e+00 : f32
    %14 = vector.broadcast %cst_11 : f32 to vector<8x128xf32>
    %15 = arith.maximumf %13, %14 : vector<8x128xf32>
    %16 = arith.truncf %15 : vector<8x128xf32> to vector<8x128xbf16>
    %c0_12 = arith.constant 0 : index
    %c0_13 = arith.constant 0 : index
    %17 = vector.load %arg6[%c0_12, %c0_13] : memref<128x128xbf16, #tpu.memory_space<vmem>>, vector<128x128xbf16>
    %cst_14 = arith.constant dense<0.000000e+00> : vector<8x128xf32>
    %18 = tpu.matmul %16, %17, %cst_14 {dimension_numbers = #tpu.dot_dimension_numbers<[1], [0], [0], [1], [0, 0, 1, 1], [], []>} : vector<8x128xbf16>, vector<128x128xbf16>, vector<8x128xf32> -> vector<8x128xf32>
    %c0_15 = arith.constant 0 : index
    %c0_16 = arith.constant 0 : index
    %19 = vector.load %arg7[%c0_15, %c0_16] : memref<1x128xf32, #tpu.memory_space<vmem>>, vector<1x128xf32>
    %20 = vector.broadcast %19 : vector<1x128xf32> to vector<8x128xf32>
    %21 = arith.addf %18, %20 : vector<8x128xf32>
    %cst_17 = arith.constant 0.000000e+00 : f32
    %22 = vector.broadcast %cst_17 : f32 to vector<8x128xf32>
    %23 = arith.maximumf %21, %22 : vector<8x128xf32>
    %24 = arith.truncf %23 : vector<8x128xf32> to vector<8x128xbf16>
    %c0_18 = arith.constant 0 : index
    %c0_19 = arith.constant 0 : index
    %25 = vector.load %arg8[%c0_18, %c0_19] : memref<128x128xbf16, #tpu.memory_space<vmem>>, vector<128x128xbf16>
    %cst_20 = arith.constant dense<0.000000e+00> : vector<8x128xf32>
    %26 = tpu.matmul %24, %25, %cst_20 {dimension_numbers = #tpu.dot_dimension_numbers<[1], [0], [0], [1], [0, 0, 1, 1], [], []>} : vector<8x128xbf16>, vector<128x128xbf16>, vector<8x128xf32> -> vector<8x128xf32>
    %27 = vector.extract_strided_slice %26 {offsets = [0, 0], sizes = [4, 128], strides = [1, 1]} : vector<8x128xf32> to vector<4x128xf32>
    %cst_21 = arith.constant dense<0.000000e+00> : vector<128xf32>
    %28 = vector.multi_reduction <add>, %27, %cst_21 [0] : vector<4x128xf32> to vector<128xf32>
    %29 = vector.shape_cast %28 : vector<128xf32> to vector<1x128xf32>
    %cst_22 = arith.constant 2.500000e-01 : f32
    %30 = vector.broadcast %cst_22 : f32 to vector<1x128xf32>
    %31 = arith.mulf %29, %30 : vector<1x128xf32>
    %cst_23 = arith.constant 0.000000e+00 : f32
    %32 = vector.broadcast %cst_23 : f32 to vector<1x128xf32>
    %33 = arith.subf %32, %31 : vector<1x128xf32>
    %34 = math.exp %33 : vector<1x128xf32>
    %cst_24 = arith.constant 1.000000e+00 : f32
    %35 = vector.broadcast %cst_24 : f32 to vector<1x128xf32>
    %36 = arith.addf %35, %34 : vector<1x128xf32>
    %cst_25 = arith.constant 1.000000e+00 : f32
    %37 = vector.broadcast %cst_25 : f32 to vector<1x128xf32>
    %38 = arith.divf %37, %36 : vector<1x128xf32>
    %c0_26 = arith.constant 0 : index
    %c0_27 = arith.constant 0 : index
    %39 = vector.load %arg9[%c0_26, %c0_27] : memref<2x128xf32, #tpu.memory_space<vmem>>, vector<1x128xf32>
    tpu.vector_store %arg9[%c0_26, %c0_27], %38 {strides = array<i32>} : memref<2x128xf32, #tpu.memory_space<vmem>>, vector<1x128xf32>,
    %40 = vector.extract_strided_slice %26 {offsets = [4, 0], sizes = [4, 128], strides = [1, 1]} : vector<8x128xf32> to vector<4x128xf32>
    %cst_28 = arith.constant dense<0.000000e+00> : vector<128xf32>
    %41 = vector.multi_reduction <add>, %40, %cst_28 [0] : vector<4x128xf32> to vector<128xf32>
    %42 = vector.shape_cast %41 : vector<128xf32> to vector<1x128xf32>
    %cst_29 = arith.constant 2.500000e-01 : f32
    %43 = vector.broadcast %cst_29 : f32 to vector<1x128xf32>
    %44 = arith.mulf %42, %43 : vector<1x128xf32>
    %cst_30 = arith.constant 0.000000e+00 : f32
    %45 = vector.broadcast %cst_30 : f32 to vector<1x128xf32>
    %46 = arith.subf %45, %44 : vector<1x128xf32>
    %47 = math.exp %46 : vector<1x128xf32>
    %cst_31 = arith.constant 1.000000e+00 : f32
    %48 = vector.broadcast %cst_31 : f32 to vector<1x128xf32>
    %49 = arith.addf %48, %47 : vector<1x128xf32>
    %cst_32 = arith.constant 1.000000e+00 : f32
    %50 = vector.broadcast %cst_32 : f32 to vector<1x128xf32>
    %51 = arith.divf %50, %49 : vector<1x128xf32>
    %c1 = arith.constant 1 : index
    %c0_33 = arith.constant 0 : index
    %52 = vector.load %arg9[%c1, %c0_33] : memref<2x128xf32, #tpu.memory_space<vmem>>, vector<1x128xf32>
    tpu.vector_store %arg9[%c1, %c0_33], %51 {strides = array<i32>} : memref<2x128xf32, #tpu.memory_space<vmem>>, vector<1x128xf32>,
    return
  }
  func.func @transform_0(%arg0: i32) -> (i32, i32) {
    %c0_i32 = arith.constant 0 : i32
    %c0_i32_0 = arith.constant 0 : i32
    %c0_i32_1 = arith.constant 0 : i32
    return %c0_i32, %c0_i32_0 : i32, i32
  }
  func.func @transform_1(%arg0: i32) -> (i32, i32) {
    %c0_i32 = arith.constant 0 : i32
    %c0_i32_0 = arith.constant 0 : i32
    %c0_i32_1 = arith.constant 0 : i32
    return %c0_i32, %c0_i32_0 : i32, i32
  }
  func.func @transform_2(%arg0: i32) -> (i32, i32) {
    %c0_i32 = arith.constant 0 : i32
    %c0_i32_0 = arith.constant 0 : i32
    %c0_i32_1 = arith.constant 0 : i32
    return %c0_i32, %c0_i32_0 : i32, i32
  }
  func.func @transform_3(%arg0: i32) -> (i32, i32) {
    %c0_i32 = arith.constant 0 : i32
    %c0_i32_0 = arith.constant 0 : i32
    %c0_i32_1 = arith.constant 0 : i32
    return %c0_i32, %c0_i32_0 : i32, i32
  }
  func.func @transform_4(%arg0: i32) -> (i32, i32) {
    %c0_i32 = arith.constant 0 : i32
    %c0_i32_0 = arith.constant 0 : i32
    %c0_i32_1 = arith.constant 0 : i32
    return %c0_i32, %c0_i32_0 : i32, i32
  }
  func.func @transform_5(%arg0: i32) -> (i32, i32) {
    %c0_i32 = arith.constant 0 : i32
    %c0_i32_0 = arith.constant 0 : i32
    %c0_i32_1 = arith.constant 0 : i32
    return %c0_i32, %c0_i32_0 : i32, i32
  }
  func.func @transform_6(%arg0: i32) -> (i32, i32) {
    %c0_i32 = arith.constant 0 : i32
    %c0_i32_0 = arith.constant 0 : i32
    %c0_i32_1 = arith.constant 0 : i32
    return %c0_i32, %c0_i32_0 : i32, i32
  }
  func.func @transform_7(%arg0: i32) -> (i32, i32) {
    %c0_i32 = arith.constant 0 : i32
    %c0_i32_0 = arith.constant 0 : i32
    %c0_i32_1 = arith.constant 0 : i32
    return %c0_i32, %c0_i32_0 : i32, i32
  }
  func.func @transform_8(%arg0: i32) -> (i32, i32) {
    %c0_i32 = arith.constant 0 : i32
    %c0_i32_0 = arith.constant 0 : i32
    %c0_i32_1 = arith.constant 0 : i32
    return %c0_i32, %c0_i32_0 : i32, i32
  }
}

</mosaic_0001>

<llo_original>
// kernel: classification_forward.4
$region0: #{classification_forward.4}
  #allocation0 [shape = 'u32[]', space=smem, size = 0x4, offset = 0x4, fixed_abs, tag = 'smem constant byte address 0x4 - core index']
  #allocation1 [shape = 'u32[72,128]{1,0:T(1,128)}', space=vmem, size = 0x9000, scoped, tag = 'internal scratch']
  %s0 = inlined_call_operand.vmem [shape: bf16[32,72], index: 0, kind: input, shape index: {}]
  %s1 = inlined_call_operand.vmem [shape: bf16[72,32], index: 1, kind: input, shape index: {}]
  %s2 = inlined_call_operand.vmem [shape: f32[1,32], index: 2, kind: input, shape index: {}]
  %s3 = inlined_call_operand.vmem [shape: bf16[32,32], index: 3, kind: output, shape index: {}]
  %s4 = sld [smem:[#allocation0]]
  $region22: #{classification_forward.4} parent=0
    _
  %s6 = ssub.s32 1, %s4
  %s7 = scalar_select 0, %s6, %s4
  // Predicated region
  $region2: #{classification_forward.4} parent=0 // pred_check
    _
  $region3: #{classification_forward.4} parent=0 // pred_check_branch
    %9 = sbr.rel (0) target = $region5
  $region4: #{classification_forward.4} parent=0 // pred_region
    _
  $region5: #{classification_forward.4} parent=0 // pred_fallthru
    _
  // Predicated region
  $region6: #{classification_forward.4} parent=0 // pred_check
    _
  $region7: #{classification_forward.4} parent=0 // pred_check_branch
    %11 = sbr.rel (0) target = $region9
  $region8: #{classification_forward.4} parent=0 // pred_region
    _
  $region9: #{classification_forward.4} parent=0 // pred_fallthru
    _
  // Predicated region
  $region10: #{classification_forward.4} parent=0 // pred_check
    _
  $region11: #{classification_forward.4} parent=0 // pred_check_branch
    %13 = sbr.rel (0) target = $region13
  $region12: #{classification_forward.4} parent=0 // pred_region
    _
  $region13: #{classification_forward.4} parent=0 // pred_fallthru
    _
  %v15 = vld [vmem:[%s0] sm:$0xf]
  %v16 = vld [vmem:[%s0 + $0x4] sm:$0xf]
  %v17 = vld [vmem:[%s0 + $0x8] sm:$0xf]
  %v18 = vld [vmem:[%s0 + $0xc] sm:$0xf]
  %v19 = vld [vmem:[%s1] sm:$0xf]
  %v20 = vld [vmem:[%s1 + $0x4] sm:$0xf]
  %v21 = vld [vmem:[%s1 + $0x8] sm:$0xf]
  %v22 = vld [vmem:[%s1 + $0xc] sm:$0xf]
  %v23 = vld [vmem:[%s1 + $0x10] sm:$0xf]
  %v24 = vld [vmem:[%s1 + $0x14] sm:$0xf]
  %v25 = vld [vmem:[%s1 + $0x18] sm:$0xf]
  %v26 = vld [vmem:[%s1 + $0x1c] sm:$0xf]
  %v27 = vld [vmem:[%s1 + $0x20] sm:$0xf]
  %v28 = vld [vmem:[%s2] sm:$0x1]
  %v30 = vperm.slane %v28, 0
  %v36 = vunpack.c.l.b16 %v15
  %v37 = vunpack.c.l.b16 %v16
  %v38 = vunpack.c.l.b16 %v17
  %v39 = vunpack.c.l.b16 %v18
  %v40 = vpack.c.b16 %v37, %v36
  %v41 = vpack.c.b16 %v39, %v38
  %v51 = vunpack.c.l.b16 %v19
  %v52 = vunpack.c.l.b16 %v20
  %v53 = vunpack.c.l.b16 %v21
  %v54 = vunpack.c.l.b16 %v22
  %v55 = vunpack.c.l.b16 %v23
  %v56 = vunpack.c.l.b16 %v24
  %v57 = vunpack.c.l.b16 %v25
  %v58 = vunpack.c.l.b16 %v26
  %v59 = vunpack.c.l.b16 %v27
  %v60 = vpack.c.b16 %v52, %v51
  %v61 = vpack.c.b16 %v54, %v53
  %v62 = vpack.c.b16 %v56, %v55
  %v63 = vpack.c.b16 %v58, %v57
  %v64 = vpack.c.b16 %v59, %v59
  %vm69 = vcmask 588800
  %v71 = vsel %vm69, %v40, 0
  %v74 = vsel %vm69, %v41, 0
  %vm76 = vcmask 1043456
  %v78 = vsel %vm76, %v64, 0
  %80 = vmatpush.bf16.msra.mxu0 0
  %81 = vmatpush.bf16.msra.mxu0 0
  %82 = vmatpush.bf16.msra.mxu0 0
  %83 = vmatpush.bf16.msra.mxu0 %v78
  %84 = vmatpush.bf16.msra.mxu0 %v63
  %85 = vmatpush.bf16.msra.mxu0 %v62
  %86 = vmatpush.bf16.msra.mxu0 %v61
  %87 = vmatpush.bf16.msra.mxu0 %v60
  %88 = vmatmul.bf16.gmra.mxu0 %v71
  %v89 = vpop.f32.mrf.mxu0
  %v90 = vadd.f32 %v30, %v89
  %v91 = vpop.f32.mrf.mxu0
  %v92 = vadd.f32 %v30, %v91
  %93 = vmatmul.bf16.gmra.mxu0 %v74
  %v94 = vpop.f32.mrf.mxu0
  %v95 = vadd.f32 %v30, %v94
  %v96 = vpop.f32.mrf.mxu0
  %v97 = vadd.f32 %v30, %v96
  %98 = vdwg.mxu0
  %v99 = vmax.f32 %v90, 0.0
  %v100 = vmax.f32 %v92, 0.0
  %v101 = vmax.f32 %v95, 0.0
  %v102 = vmax.f32 %v97, 0.0
  %v103 = vpack.c.bf16 %v99, %v99
  %v104 = vpack.c.bf16 %v100, %v100
  %v105 = vpack.c.bf16 %v101, %v101
  %v106 = vpack.c.bf16 %v102, %v102
  %vm107 = vcmask 257024
  %108 = vst.msk [vmem:[%s3] sm:$0xf] %vm107, %v103
  %109 = vst.msk [vmem:[%s3 + $0x4] sm:$0xf] %vm107, %v104
  %110 = vst.msk [vmem:[%s3 + $0x8] sm:$0xf] %vm107, %v105
  %111 = vst.msk [vmem:[%s3 + $0xc] sm:$0xf] %vm107, %v106
  // Predicated region
  $region14: #{classification_forward.4} parent=0 // pred_check
    _
  $region15: #{classification_forward.4} parent=0 // pred_check_branch
    %113 = sbr.rel (0) target = $region17
  $region16: #{classification_forward.4} parent=0 // pred_region
    _
  $region17: #{classification_forward.4} parent=0 // pred_fallthru
    _
  // Predicated region
  $region18: #{classification_forward.4} parent=0 // pred_check
    _
  $region19: #{classification_forward.4} parent=0 // pred_check_branch
    %115 = sbr.rel (0) target = $region21
  $region20: #{classification_forward.4} parent=0 // pred_region
    _
  $region21: #{classification_forward.4} parent=0 // pred_fallthru
    _

// kernel: classification_forward.3
$region0: #{classification_forward.3}
  #allocation0 [shape = 'u32[]', space=smem, size = 0x4, offset = 0x4, fixed_abs, tag = 'smem constant byte address 0x4 - core index']
  #allocation1 [shape = 'u32[72,128]{1,0:T(1,128)}', space=vmem, size = 0x9000, scoped, tag = 'internal scratch']
  %s0 = inlined_call_operand.vmem [shape: bf16[128,27], index: 0, kind: input, shape index: {}]
  %s1 = inlined_call_operand.vmem [shape: bf16[27,8], index: 1, kind: input, shape index: {}]
  %s2 = inlined_call_operand.vmem [shape: f32[1,8], index: 2, kind: input, shape index: {}]
  %s3 = inlined_call_operand.vmem [shape: bf16[128,8], index: 3, kind: output, shape index: {}]
  %s4 = sld [smem:[#allocation0]]
  $region22: #{classification_forward.3} parent=0
    _
  %s6 = ssub.s32 1, %s4
  %s7 = scalar_select 0, %s6, %s4
  // Predicated region
  $region2: #{classification_forward.3} parent=0 // pred_check
    _
  $region3: #{classification_forward.3} parent=0 // pred_check_branch
    %9 = sbr.rel (0) target = $region5
  $region4: #{classification_forward.3} parent=0 // pred_region
    _
  $region5: #{classification_forward.3} parent=0 // pred_fallthru
    _
  // Predicated region
  $region6: #{classification_forward.3} parent=0 // pred_check
    _
  $region7: #{classification_forward.3} parent=0 // pred_check_branch
    %11 = sbr.rel (0) target = $region9
  $region8: #{classification_forward.3} parent=0 // pred_region
    _
  $region9: #{classification_forward.3} parent=0 // pred_fallthru
    _
  // Predicated region
  $region10: #{classification_forward.3} parent=0 // pred_check
    _
  $region11: #{classification_forward.3} parent=0 // pred_check_branch
    %13 = sbr.rel (0) target = $region13
  $region12: #{classification_forward.3} parent=0 // pred_region
    _
  $region13: #{classification_forward.3} parent=0 // pred_fallthru
    _
  %v15 = vld [vmem:[%s0] sm:$0xf]
  %v16 = vld [vmem:[%s0 + $0x4] sm:$0xf]
  %v17 = vld [vmem:[%s0 + $0x8] sm:$0xf]
  %v18 = vld [vmem:[%s0 + $0xc] sm:$0xf]
  %v19 = vld [vmem:[%s0 + $0x10] sm:$0xf]
  %v20 = vld [vmem:[%s0 + $0x14] sm:$0xf]
  %v21 = vld [vmem:[%s0 + $0x18] sm:$0xf]
  %v22 = vld [vmem:[%s0 + $0x1c] sm:$0xf]
  %v23 = vld [vmem:[%s0 + $0x20] sm:$0xf]
  %v24 = vld [vmem:[%s0 + $0x24] sm:$0xf]
  %v25 = vld [vmem:[%s0 + $0x28] sm:$0xf]
  %v26 = vld [vmem:[%s0 + $0x2c] sm:$0xf]
  %v27 = vld [vmem:[%s0 + $0x30] sm:$0xf]
  %v28 = vld [vmem:[%s0 + $0x34] sm:$0xf]
  %v29 = vld [vmem:[%s0 + $0x38] sm:$0xf]
  %v30 = vld [vmem:[%s0 + $0x3c] sm:$0xf]
  %v31 = vld [vmem:[%s1] sm:$0xf]
  %v32 = vld [vmem:[%s1 + $0x4] sm:$0xf]
  %v33 = vld [vmem:[%s1 + $0x8] sm:$0xf]
  %v34 = vld [vmem:[%s1 + $0xc] sm:$0x3]
  %v35 = vld [vmem:[%s2] sm:$0x1]
  %v37 = vperm.slane %v35, 0
  %v55 = vunpack.c.l.b16 %v15
  %v56 = vunpack.c.l.b16 %v16
  %v57 = vunpack.c.l.b16 %v17
  %v58 = vunpack.c.l.b16 %v18
  %v59 = vunpack.c.l.b16 %v19
  %v60 = vunpack.c.l.b16 %v20
  %v61 = vunpack.c.l.b16 %v21
  %v62 = vunpack.c.l.b16 %v22
  %v63 = vunpack.c.l.b16 %v23
  %v64 = vunpack.c.l.b16 %v24
  %v65 = vunpack.c.l.b16 %v25
  %v66 = vunpack.c.l.b16 %v26
  %v67 = vunpack.c.l.b16 %v27
  %v68 = vunpack.c.l.b16 %v28
  %v69 = vunpack.c.l.b16 %v29
  %v70 = vunpack.c.l.b16 %v30
  %v71 = vpack.c.b16 %v56, %v55
  %v72 = vpack.c.b16 %v58, %v57
  %v73 = vpack.c.b16 %v60, %v59
  %v74 = vpack.c.b16 %v62, %v61
  %v75 = vpack.c.b16 %v64, %v63
  %v76 = vpack.c.b16 %v66, %v65
  %v77 = vpack.c.b16 %v68, %v67
  %v78 = vpack.c.b16 %v70, %v69
  %v83 = vunpack.c.l.b16 %v31
  %v84 = vunpack.c.l.b16 %v32
  %v85 = vunpack.c.l.b16 %v33
  %v86 = vunpack.c.l.b16 %v34
  %v87 = vpack.c.b16 %v84, %v83
  %v88 = vpack.c.b16 %v86, %v85
  %vm90 = vcmask 220160
  %v92 = vsel %vm90, %v71, 0
  %v95 = vsel %vm90, %v72, 0
  %v98 = vsel %vm90, %v73, 0
  %v101 = vsel %vm90, %v74, 0
  %v104 = vsel %vm90, %v75, 0
  %v107 = vsel %vm90, %v76, 0
  %v110 = vsel %vm90, %v77, 0
  %v113 = vsel %vm90, %v78, 0
  %vm115 = vcmask 1044480
  %vm116 = vcmask 1045504
  %v117 = vsel %vm115, 4294967295, 65535
  %v118 = vsel %vm116, %v117, 0
  %v120 = vand.u32 %v88, %v118
  %122 = vmatpush.bf16.msra.mxu0 0
  %123 = vmatpush.bf16.msra.mxu0 0
  %124 = vmatpush.bf16.msra.mxu0 0
  %125 = vmatpush.bf16.msra.mxu0 0
  %126 = vmatpush.bf16.msra.mxu0 0
  %127 = vmatpush.bf16.msra.mxu0 0
  %128 = vmatpush.bf16.msra.mxu0 %v120
  %129 = vmatpush.bf16.msra.mxu0 %v87
  %130 = vmatmul.bf16.gmra.mxu0 %v92
  %v131 = vpop.f32.mrf.mxu0
  %v132 = vadd.f32 %v37, %v131
  %v133 = vpop.f32.mrf.mxu0
  %v134 = vadd.f32 %v37, %v133
  %135 = vmatmul.bf16.gmra.mxu0 %v95
  %v136 = vpop.f32.mrf.mxu0
  %v137 = vadd.f32 %v37, %v136
  %v138 = vpop.f32.mrf.mxu0
  %v139 = vadd.f32 %v37, %v138
  %140 = vmatmul.bf16.gmra.mxu0 %v98
  %v141 = vpop.f32.mrf.mxu0
  %v142 = vadd.f32 %v37, %v141
  %v143 = vpop.f32.mrf.mxu0
  %v144 = vadd.f32 %v37, %v143
  %145 = vmatmul.bf16.gmra.mxu0 %v101
  %v146 = vpop.f32.mrf.mxu0
  %v147 = vadd.f32 %v37, %v146
  %v148 = vpop.f32.mrf.mxu0
  %v149 = vadd.f32 %v37, %v148
  %150 = vmatmul.bf16.gmra.mxu0 %v104
  %v151 = vpop.f32.mrf.mxu0
  %v152 = vadd.f32 %v37, %v151
  %v153 = vpop.f32.mrf.mxu0
  %v154 = vadd.f32 %v37, %v153
  %155 = vmatmul.bf16.gmra.mxu0 %v107
  %v156 = vpop.f32.mrf.mxu0
  %v157 = vadd.f32 %v37, %v156
  %v158 = vpop.f32.mrf.mxu0
  %v159 = vadd.f32 %v37, %v158
  %160 = vmatmul.bf16.gmra.mxu0 %v110
  %v161 = vpop.f32.mrf.mxu0
  %v162 = vadd.f32 %v37, %v161
  %v163 = vpop.f32.mrf.mxu0
  %v164 = vadd.f32 %v37, %v163
  %165 = vmatmul.bf16.gmra.mxu0 %v113
  %v166 = vpop.f32.mrf.mxu0
  %v167 = vadd.f32 %v37, %v166
  %v168 = vpop.f32.mrf.mxu0
  %v169 = vadd.f32 %v37, %v168
  %170 = vdwg.mxu0
  %v171 = vmax.f32 %v132, 0.0
  %v172 = vmax.f32 %v134, 0.0
  %v173 = vmax.f32 %v137, 0.0
  %v174 = vmax.f32 %v139, 0.0
  %v175 = vmax.f32 %v142, 0.0
  %v176 = vmax.f32 %v144, 0.0
  %v177 = vmax.f32 %v147, 0.0
  %v178 = vmax.f32 %v149, 0.0
  %v179 = vmax.f32 %v152, 0.0
  %v180 = vmax.f32 %v154, 0.0
  %v181 = vmax.f32 %v157, 0.0
  %v182 = vmax.f32 %v159, 0.0
  %v183 = vmax.f32 %v162, 0.0
  %v184 = vmax.f32 %v164, 0.0
  %v185 = vmax.f32 %v167, 0.0
  %v186 = vmax.f32 %v169, 0.0
  %v187 = vpack.c.bf16 %v171, %v171
  %v188 = vpack.c.bf16 %v172, %v172
  %v189 = vpack.c.bf16 %v173, %v173
  %v190 = vpack.c.bf16 %v174, %v174
  %v191 = vpack.c.bf16 %v175, %v175
  %v192 = vpack.c.bf16 %v176, %v176
  %v193 = vpack.c.bf16 %v177, %v177
  %v194 = vpack.c.bf16 %v178, %v178
  %v195 = vpack.c.bf16 %v179, %v179
  %v196 = vpack.c.bf16 %v180, %v180
  %v197 = vpack.c.bf16 %v181, %v181
  %v198 = vpack.c.bf16 %v182, %v182
  %v199 = vpack.c.bf16 %v183, %v183
  %v200 = vpack.c.bf16 %v184, %v184
  %v201 = vpack.c.bf16 %v185, %v185
  %v202 = vpack.c.bf16 %v186, %v186
  %vm203 = vcmask 60416
  %204 = vst.msk [vmem:[%s3] sm:$0xf] %vm203, %v187
  %205 = vst.msk [vmem:[%s3 + $0x4] sm:$0xf] %vm203, %v188
  %206 = vst.msk [vmem:[%s3 + $0x8] sm:$0xf] %vm203, %v189
  %207 = vst.msk [vmem:[%s3 + $0xc] sm:$0xf] %vm203, %v190
  %208 = vst.msk [vmem:[%s3 + $0x10] sm:$0xf] %vm203, %v191
  %209 = vst.msk [vmem:[%s3 + $0x14] sm:$0xf] %vm203, %v192
  %210 = vst.msk [vmem:[%s3 + $0x18] sm:$0xf] %vm203, %v193
  %211 = vst.msk [vmem:[%s3 + $0x1c] sm:$0xf] %vm203, %v194
  %212 = vst.msk [vmem:[%s3 + $0x20] sm:$0xf] %vm203, %v195
  %213 = vst.msk [vmem:[%s3 + $0x24] sm:$0xf] %vm203, %v196
  %214 = vst.msk [vmem:[%s3 + $0x28] sm:$0xf] %vm203, %v197
  %215 = vst.msk [vmem:[%s3 + $0x2c] sm:$0xf] %vm203, %v198
  %216 = vst.msk [vmem:[%s3 + $0x30] sm:$0xf] %vm203, %v199
  %217 = vst.msk [vmem:[%s3 + $0x34] sm:$0xf] %vm203, %v200
  %218 = vst.msk [vmem:[%s3 + $0x38] sm:$0xf] %vm203, %v201
  %219 = vst.msk [vmem:[%s3 + $0x3c] sm:$0xf] %vm203, %v202
  // Predicated region
  $region14: #{classification_forward.3} parent=0 // pred_check
    _
  $region15: #{classification_forward.3} parent=0 // pred_check_branch
    %221 = sbr.rel (0) target = $region17
  $region16: #{classification_forward.3} parent=0 // pred_region
    _
  $region17: #{classification_forward.3} parent=0 // pred_fallthru
    _
  // Predicated region
  $region18: #{classification_forward.3} parent=0 // pred_check
    _
  $region19: #{classification_forward.3} parent=0 // pred_check_branch
    %223 = sbr.rel (0) target = $region21
  $region20: #{classification_forward.3} parent=0 // pred_region
    _
  $region21: #{classification_forward.3} parent=0 // pred_fallthru
    _

// kernel: classification_forward.5
$region0: #{classification_forward.5}
  #allocation0 [shape = 'u32[]', space=smem, size = 0x4, offset = 0x4, fixed_abs, tag = 'smem constant byte address 0x4 - core index']
  #allocation1 [shape = 'u32[72,128]{1,0:T(1,128)}', space=vmem, size = 0x9000, scoped, tag = 'internal scratch']
  %s0 = inlined_call_operand.vmem [shape: bf16[8,288], index: 0, kind: input, shape index: {}]
  %s1 = inlined_call_operand.vmem [shape: bf16[288,128], index: 1, kind: input, shape index: {}]
  %s2 = inlined_call_operand.vmem [shape: f32[1,128], index: 2, kind: input, shape index: {}]
  %s3 = inlined_call_operand.vmem [shape: bf16[128,128], index: 3, kind: input, shape index: {}]
  %s4 = inlined_call_operand.vmem [shape: f32[1,128], index: 4, kind: input, shape index: {}]
  %s5 = inlined_call_operand.vmem [shape: bf16[128,128], index: 5, kind: input, shape index: {}]
  %s6 = inlined_call_operand.vmem [shape: f32[1,128], index: 6, kind: input, shape index: {}]
  %s7 = inlined_call_operand.vmem [shape: bf16[128,128], index: 7, kind: input, shape index: {}]
  %s8 = inlined_call_operand.hbm [shape: f32[2,128], index: 8, kind: output, shape index: {}]
  %s9 = sld [smem:[#allocation0]]
  $region42: #{classification_forward.5} parent=0
    _
  %s11 = ssub.s32 1, %s9
  %s12 = scalar_select 0, %s11, %s9
  $region1: #{classification_forward.5} parent=0
    #allocation2 [shape = 'u8[1024]{0}', space=vmem, size = 0x400, scoped, tag = 'output window, operand 0, single buffered']
    #allocation3 [shape = 's32[1]{0}', space=sflag, size = 0x4, scoped, tag = 'scoped memory for classification_forward.5']
    %13 = vsyncpa [#allocation3], 0
    // Predicated region
    $region2: #{classification_forward.5} parent=1 // pred_check
      _
    $region3: #{classification_forward.5} parent=1 // pred_check_branch
      %15 = sbr.rel (0) target = $region5
    $region4: #{classification_forward.5} parent=1 // pred_region
      _
    $region5: #{classification_forward.5} parent=1 // pred_fallthru
      _
    // Predicated region
    $region6: #{classification_forward.5} parent=1 // pred_check
      _
    $region7: #{classification_forward.5} parent=1 // pred_check_branch
      %17 = sbr.rel (0) target = $region9
    $region8: #{classification_forward.5} parent=1 // pred_region
      _
    $region9: #{classification_forward.5} parent=1 // pred_fallthru
      _
    // Predicated region
    $region10: #{classification_forward.5} parent=1 // pred_check
      _
    $region11: #{classification_forward.5} parent=1 // pred_check_branch
      %19 = sbr.rel (0) target = $region13
    $region12: #{classification_forward.5} parent=1 // pred_region
      _
    $region13: #{classification_forward.5} parent=1 // pred_fallthru
      _
    // Predicated region
    $region14: #{classification_forward.5} parent=1 // pred_check
      _
    $region15: #{classification_forward.5} parent=1 // pred_check_branch
      %21 = sbr.rel (0) target = $region17
    $region16: #{classification_forward.5} parent=1 // pred_region
      _
    $region17: #{classification_forward.5} parent=1 // pred_fallthru
      _
    // Predicated region
    $region18: #{classification_forward.5} parent=1 // pred_check
      _
    $region19: #{classification_forward.5} parent=1 // pred_check_branch
      %23 = sbr.rel (0) target = $region21
    $region20: #{classification_forward.5} parent=1 // pred_region
      _
    $region21: #{classification_forward.5} parent=1 // pred_fallthru
      _
    // Predicated region
    $region22: #{classification_forward.5} parent=1 // pred_check
      _
    $region23: #{classification_forward.5} parent=1 // pred_check_branch
      %25 = sbr.rel (0) target = $region25
    $region24: #{classification_forward.5} parent=1 // pred_region
      _
    $region25: #{classification_forward.5} parent=1 // pred_fallthru
      _
    // Predicated region
    $region26: #{classification_forward.5} parent=1 // pred_check
      _
    $region27: #{classification_forward.5} parent=1 // pred_check_branch
      %27 = sbr.rel (0) target = $region29
    $region28: #{classification_forward.5} parent=1 // pred_region
      _
    $region29: #{classification_forward.5} parent=1 // pred_fallthru
      _
    // Predicated region
    $region30: #{classification_forward.5} parent=1 // pred_check
      _
    $region31: #{classification_forward.5} parent=1 // pred_check_branch
      %29 = sbr.rel (0) target = $region33
    $region32: #{classification_forward.5} parent=1 // pred_region
      _
    $region33: #{classification_forward.5} parent=1 // pred_fallthru
      _
    %v31 = vld [vmem:[%s0] sm:$0xff]
    %v32 = vld [vmem:[%s0 + $0x8] sm:$0xf]
    %v33 = vld [vmem:[%s1] sm:$0xf]
    %v34 = vld [vmem:[%s1 + $0x4] sm:$0xf]
    %v35 = vld [vmem:[%s1 + $0x8] sm:$0xf]
    %v36 = vld [vmem:[%s1 + $0xc] sm:$0xf]
    %v37 = vld [vmem:[%s1 + $0x10] sm:$0xf]
    %v38 = vld [vmem:[%s1 + $0x14] sm:$0xf]
    %v39 = vld [vmem:[%s1 + $0x18] sm:$0xf]
    %v40 = vld [vmem:[%s1 + $0x1c] sm:$0xf]
    %v41 = vld [vmem:[%s1 + $0x20] sm:$0xf]
    %v42 = vld [vmem:[%s1 + $0x24] sm:$0xf]
    %v43 = vld [vmem:[%s1 + $0x28] sm:$0xf]
    %v44 = vld [vmem:[%s1 + $0x2c] sm:$0xf]
    %v45 = vld [vmem:[%s1 + $0x30] sm:$0xf]
    %v46 = vld [vmem:[%s1 + $0x34] sm:$0xf]
    %v47 = vld [vmem:[%s1 + $0x38] sm:$0xf]
    %v48 = vld [vmem:[%s1 + $0x3c] sm:$0xf]
    %v49 = vld [vmem:[%s1 + $0x40] sm:$0xf]
    %v50 = vld [vmem:[%s1 + $0x44] sm:$0xf]
    %v51 = vld [vmem:[%s1 + $0x48] sm:$0xf]
    %v52 = vld [vmem:[%s1 + $0x4c] sm:$0xf]
    %v53 = vld [vmem:[%s1 + $0x50] sm:$0xf]
    %v54 = vld [vmem:[%s1 + $0x54] sm:$0xf]
    %v55 = vld [vmem:[%s1 + $0x58] sm:$0xf]
    %v56 = vld [vmem:[%s1 + $0x5c] sm:$0xf]
    %v57 = vld [vmem:[%s1 + $0x60] sm:$0xf]
    %v58 = vld [vmem:[%s1 + $0x64] sm:$0xf]
    %v59 = vld [vmem:[%s1 + $0x68] sm:$0xf]
    %v60 = vld [vmem:[%s1 + $0x6c] sm:$0xf]
    %v61 = vld [vmem:[%s1 + $0x70] sm:$0xf]
    %v62 = vld [vmem:[%s1 + $0x74] sm:$0xf]
    %v63 = vld [vmem:[%s1 + $0x78] sm:$0xf]
    %v64 = vld [vmem:[%s1 + $0x7c] sm:$0xf]
    %v65 = vld [vmem:[%s1 + $0x80] sm:$0xf]
    %v66 = vld [vmem:[%s1 + $0x84] sm:$0xf]
    %v67 = vld [vmem:[%s1 + $0x88] sm:$0xf]
    %v68 = vld [vmem:[%s1 + $0x8c] sm:$0xf]
    %v69 = vld [vmem:[%s2] sm:$0x1]
    %v71 = vperm.slane %v69, 0
    %v75 = vunpack.c.l.b16 %v31
    %v76 = vunpack.c.h.b16 %v31
    %v77 = vunpack.c.l.b16 %v32
    %v78 = vpack.c.b16 %v75, %v75
    %v79 = vpack.c.b16 %v76, %v76
    %v80 = vpack.c.b16 %v77, %v77
    %v119 = vunpack.c.l.b16 %v33
    %v120 = vunpack.c.l.b16 %v34
    %v121 = vunpack.c.l.b16 %v35
    %v122 = vunpack.c.l.b16 %v36
    %v123 = vunpack.c.l.b16 %v37
    %v124 = vunpack.c.l.b16 %v38
    %v125 = vunpack.c.l.b16 %v39
    %v126 = vunpack.c.l.b16 %v40
    %v127 = vunpack.c.l.b16 %v41
    %v128 = vunpack.c.l.b16 %v42
    %v129 = vunpack.c.l.b16 %v43
    %v130 = vunpack.c.l.b16 %v44
    %v131 = vunpack.c.l.b16 %v45
    %v132 = vunpack.c.l.b16 %v46
    %v133 = vunpack.c.l.b16 %v47
    %v134 = vunpack.c.l.b16 %v48
    %v135 = vunpack.c.l.b16 %v49
    %v136 = vunpack.c.l.b16 %v50
    %v137 = vunpack.c.l.b16 %v51
    %v138 = vunpack.c.l.b16 %v52
    %v139 = vunpack.c.l.b16 %v53
    %v140 = vunpack.c.l.b16 %v54
    %v141 = vunpack.c.l.b16 %v55
    %v142 = vunpack.c.l.b16 %v56
    %v143 = vunpack.c.l.b16 %v57
    %v144 = vunpack.c.l.b16 %v58
    %v145 = vunpack.c.l.b16 %v59
    %v146 = vunpack.c.l.b16 %v60
    %v147 = vunpack.c.l.b16 %v61
    %v148 = vunpack.c.l.b16 %v62
    %v149 = vunpack.c.l.b16 %v63
    %v150 = vunpack.c.l.b16 %v64
    %v151 = vunpack.c.l.b16 %v65
    %v152 = vunpack.c.l.b16 %v66
    %v153 = vunpack.c.l.b16 %v67
    %v154 = vunpack.c.l.b16 %v68
    %v155 = vpack.c.b16 %v120, %v119
    %v156 = vpack.c.b16 %v122, %v121
    %v157 = vpack.c.b16 %v124, %v123
    %v158 = vpack.c.b16 %v126, %v125
    %v159 = vpack.c.b16 %v128, %v127
    %v160 = vpack.c.b16 %v130, %v129
    %v161 = vpack.c.b16 %v132, %v131
    %v162 = vpack.c.b16 %v134, %v133
    %v163 = vpack.c.b16 %v136, %v135
    %v164 = vpack.c.b16 %v138, %v137
    %v165 = vpack.c.b16 %v140, %v139
    %v166 = vpack.c.b16 %v142, %v141
    %v167 = vpack.c.b16 %v144, %v143
    %v168 = vpack.c.b16 %v146, %v145
    %v169 = vpack.c.b16 %v148, %v147
    %v170 = vpack.c.b16 %v150, %v149
    %v171 = vpack.c.b16 %v152, %v151
    %v172 = vpack.c.b16 %v154, %v153
    %vm191 = vcmask 261120
    %v193 = vsel %vm191, %v80, 0
    %195 = vmatpush.bf16.msra.mxu0 %v162
    %196 = vmatpush.bf16.msra.mxu0 %v161
    %197 = vmatpush.bf16.msra.mxu0 %v160
    %198 = vmatpush.bf16.msra.mxu0 %v159
    %199 = vmatpush.bf16.msra.mxu0 %v158
    %200 = vmatpush.bf16.msra.mxu0 %v157
    %201 = vmatpush.bf16.msra.mxu0 %v156
    %202 = vmatpush.bf16.msra.mxu0 %v155
    %203 = vmatmul.bf16.gmra.mxu0 %v78
    %v204 = vpop.f32.mrf.mxu0
    %v205 = vadd.f32 %v71, %v204
    %v206 = vpop.f32.mrf.mxu0
    %207 = vdwg.mxu0
    %208 = vmatpush.bf16.msra.mxu0 %v170
    %209 = vmatpush.bf16.msra.mxu0 %v169
    %210 = vmatpush.bf16.msra.mxu0 %v168
    %211 = vmatpush.bf16.msra.mxu0 %v167
    %212 = vmatpush.bf16.msra.mxu0 %v166
    %213 = vmatpush.bf16.msra.mxu0 %v165
    %214 = vmatpush.bf16.msra.mxu0 %v164
    %215 = vmatpush.bf16.msra.mxu0 %v163
    %216 = vmatmul.bf16.gmra.mxu0 %v79
    %v217 = vpop.f32.mrf.mxu0
    %v218 = vadd.f32 %v205, %v217
    %v219 = vpop.f32.mrf.mxu0
    %220 = vdwg.mxu0
    %221 = vmatpush.bf16.msra.mxu0 0
    %222 = vmatpush.bf16.msra.mxu0 0
    %223 = vmatpush.bf16.msra.mxu0 0
    %224 = vmatpush.bf16.msra.mxu0 0
    %225 = vmatpush.bf16.msra.mxu0 0
    %226 = vmatpush.bf16.msra.mxu0 0
    %227 = vmatpush.bf16.msra.mxu0 %v172
    %228 = vmatpush.bf16.msra.mxu0 %v171
    %229 = vmatmul.bf16.gmra.mxu0 %v193
    %v230 = vpop.f32.mrf.mxu0
    %v231 = vadd.f32 %v218, %v230
    %v232 = vpop.f32.mrf.mxu0
    %233 = vdwg.mxu0
    %v234 = vmax.f32 %v231, 0.0
    %v235 = vpack.c.bf16 %v234, %v234
    %v236 = vld [vmem:[%s3] sm:$0xf]
    %v237 = vld [vmem:[%s3 + $0x4] sm:$0xf]
    %v238 = vld [vmem:[%s3 + $0x8] sm:$0xf]
    %v239 = vld [vmem:[%s3 + $0xc] sm:$0xf]
    %v240 = vld [vmem:[%s3 + $0x10] sm:$0xf]
    %v241 = vld [vmem:[%s3 + $0x14] sm:$0xf]
    %v242 = vld [vmem:[%s3 + $0x18] sm:$0xf]
    %v243 = vld [vmem:[%s3 + $0x1c] sm:$0xf]
    %v244 = vld [vmem:[%s3 + $0x20] sm:$0xf]
    %v245 = vld [vmem:[%s3 + $0x24] sm:$0xf]
    %v246 = vld [vmem:[%s3 + $0x28] sm:$0xf]
    %v247 = vld [vmem:[%s3 + $0x2c] sm:$0xf]
    %v248 = vld [vmem:[%s3 + $0x30] sm:$0xf]
    %v249 = vld [vmem:[%s3 + $0x34] sm:$0xf]
    %v250 = vld [vmem:[%s3 + $0x38] sm:$0xf]
    %v251 = vld [vmem:[%s3 + $0x3c] sm:$0xf]
    %v252 = vld [vmem:[%s4] sm:$0x1]
    %v254 = vperm.slane %v252, 0
    %v272 = vunpack.c.l.b16 %v236
    %v273 = vunpack.c.l.b16 %v237
    %v274 = vunpack.c.l.b16 %v238
    %v275 = vunpack.c.l.b16 %v239
    %v276 = vunpack.c.l.b16 %v240
    %v277 = vunpack.c.l.b16 %v241
    %v278 = vunpack.c.l.b16 %v242
    %v279 = vunpack.c.l.b16 %v243
    %v280 = vunpack.c.l.b16 %v244
    %v281 = vunpack.c.l.b16 %v245
    %v282 = vunpack.c.l.b16 %v246
    %v283 = vunpack.c.l.b16 %v247
    %v284 = vunpack.c.l.b16 %v248
    %v285 = vunpack.c.l.b16 %v249
    %v286 = vunpack.c.l.b16 %v250
    %v287 = vunpack.c.l.b16 %v251
    %v288 = vpack.c.b16 %v273, %v272
    %v289 = vpack.c.b16 %v275, %v274
    %v290 = vpack.c.b16 %v277, %v276
    %v291 = vpack.c.b16 %v279, %v278
    %v292 = vpack.c.b16 %v281, %v280
    %v293 = vpack.c.b16 %v283, %v282
    %v294 = vpack.c.b16 %v285, %v284
    %v295 = vpack.c.b16 %v287, %v286
    %304 = vmatpush.bf16.msra.mxu0 %v295
    %305 = vmatpush.bf16.msra.mxu0 %v294
    %306 = vmatpush.bf16.msra.mxu0 %v293
    %307 = vmatpush.bf16.msra.mxu0 %v292
    %308 = vmatpush.bf16.msra.mxu0 %v291
    %309 = vmatpush.bf16.msra.mxu0 %v290
    %310 = vmatpush.bf16.msra.mxu0 %v289
    %311 = vmatpush.bf16.msra.mxu0 %v288
    %312 = vmatmul.bf16.gmra.mxu0 %v235
    %v313 = vpop.f32.mrf.mxu0
    %v314 = vadd.f32 %v254, %v313
    %v315 = vpop.f32.mrf.mxu0
    %316 = vdwg.mxu0
    %v317 = vmax.f32 %v314, 0.0
    %v318 = vpack.c.bf16 %v317, %v317
    %v319 = vld [vmem:[%s5] sm:$0xf]
    %v320 = vld [vmem:[%s5 + $0x4] sm:$0xf]
    %v321 = vld [vmem:[%s5 + $0x8] sm:$0xf]
    %v322 = vld [vmem:[%s5 + $0xc] sm:$0xf]
    %v323 = vld [vmem:[%s5 + $0x10] sm:$0xf]
    %v324 = vld [vmem:[%s5 + $0x14] sm:$0xf]
    %v325 = vld [vmem:[%s5 + $0x18] sm:$0xf]
    %v326 = vld [vmem:[%s5 + $0x1c] sm:$0xf]
    %v327 = vld [vmem:[%s5 + $0x20] sm:$0xf]
    %v328 = vld [vmem:[%s5 + $0x24] sm:$0xf]
    %v329 = vld [vmem:[%s5 + $0x28] sm:$0xf]
    %v330 = vld [vmem:[%s5 + $0x2c] sm:$0xf]
    %v331 = vld [vmem:[%s5 + $0x30] sm:$0xf]
    %v332 = vld [vmem:[%s5 + $0x34] sm:$0xf]
    %v333 = vld [vmem:[%s5 + $0x38] sm:$0xf]
    %v334 = vld [vmem:[%s5 + $0x3c] sm:$0xf]
    %v335 = vld [vmem:[%s6] sm:$0x1]
    %v337 = vperm.slane %v335, 0
    %v355 = vunpack.c.l.b16 %v319
    %v356 = vunpack.c.l.b16 %v320
    %v357 = vunpack.c.l.b16 %v321
    %v358 = vunpack.c.l.b16 %v322
    %v359 = vunpack.c.l.b16 %v323
    %v360 = vunpack.c.l.b16 %v324
    %v361 = vunpack.c.l.b16 %v325
    %v362 = vunpack.c.l.b16 %v326
    %v363 = vunpack.c.l.b16 %v327
    %v364 = vunpack.c.l.b16 %v328
    %v365 = vunpack.c.l.b16 %v329
    %v366 = vunpack.c.l.b16 %v330
    %v367 = vunpack.c.l.b16 %v331
    %v368 = vunpack.c.l.b16 %v332
    %v369 = vunpack.c.l.b16 %v333
    %v370 = vunpack.c.l.b16 %v334
    %v371 = vpack.c.b16 %v356, %v355
    %v372 = vpack.c.b16 %v358, %v357
    %v373 = vpack.c.b16 %v360, %v359
    %v374 = vpack.c.b16 %v362, %v361
    %v375 = vpack.c.b16 %v364, %v363
    %v376 = vpack.c.b16 %v366, %v365
    %v377 = vpack.c.b16 %v368, %v367
    %v378 = vpack.c.b16 %v370, %v369
    %387 = vmatpush.bf16.msra.mxu0 %v378
    %388 = vmatpush.bf16.msra.mxu0 %v377
    %389 = vmatpush.bf16.msra.mxu0 %v376
    %390 = vmatpush.bf16.msra.mxu0 %v375
    %391 = vmatpush.bf16.msra.mxu0 %v374
    %392 = vmatpush.bf16.msra.mxu0 %v373
    %393 = vmatpush.bf16.msra.mxu0 %v372
    %394 = vmatpush.bf16.msra.mxu0 %v371
    %395 = vmatmul.bf16.gmra.mxu0 %v318
    %v396 = vpop.f32.mrf.mxu0
    %v397 = vadd.f32 %v337, %v396
    %v398 = vpop.f32.mrf.mxu0
    %399 = vdwg.mxu0
    %v400 = vmax.f32 %v397, 0.0
    %v401 = vpack.c.bf16 %v400, %v400
    %v402 = vld [vmem:[%s7] sm:$0xf]
    %v403 = vld [vmem:[%s7 + $0x4] sm:$0xf]
    %v404 = vld [vmem:[%s7 + $0x8] sm:$0xf]
    %v405 = vld [vmem:[%s7 + $0xc] sm:$0xf]
    %v406 = vld [vmem:[%s7 + $0x10] sm:$0xf]
    %v407 = vld [vmem:[%s7 + $0x14] sm:$0xf]
    %v408 = vld [vmem:[%s7 + $0x18] sm:$0xf]
    %v409 = vld [vmem:[%s7 + $0x1c] sm:$0xf]
    %v410 = vld [vmem:[%s7 + $0x20] sm:$0xf]
    %v411 = vld [vmem:[%s7 + $0x24] sm:$0xf]
    %v412 = vld [vmem:[%s7 + $0x28] sm:$0xf]
    %v413 = vld [vmem:[%s7 + $0x2c] sm:$0xf]
    %v414 = vld [vmem:[%s7 + $0x30] sm:$0xf]
    %v415 = vld [vmem:[%s7 + $0x34] sm:$0xf]
    %v416 = vld [vmem:[%s7 + $0x38] sm:$0xf]
    %v417 = vld [vmem:[%s7 + $0x3c] sm:$0xf]
    %v434 = vunpack.c.l.b16 %v402
    %v435 = vunpack.c.l.b16 %v403
    %v436 = vunpack.c.l.b16 %v404
    %v437 = vunpack.c.l.b16 %v405
    %v438 = vunpack.c.l.b16 %v406
    %v439 = vunpack.c.l.b16 %v407
    %v440 = vunpack.c.l.b16 %v408
    %v441 = vunpack.c.l.b16 %v409
    %v442 = vunpack.c.l.b16 %v410
    %v443 = vunpack.c.l.b16 %v411
    %v444 = vunpack.c.l.b16 %v412
    %v445 = vunpack.c.l.b16 %v413
    %v446 = vunpack.c.l.b16 %v414
    %v447 = vunpack.c.l.b16 %v415
    %v448 = vunpack.c.l.b16 %v416
    %v449 = vunpack.c.l.b16 %v417
    %v450 = vpack.c.b16 %v435, %v434
    %v451 = vpack.c.b16 %v437, %v436
    %v452 = vpack.c.b16 %v439, %v438
    %v453 = vpack.c.b16 %v441, %v440
    %v454 = vpack.c.b16 %v443, %v442
    %v455 = vpack.c.b16 %v445, %v444
    %v456 = vpack.c.b16 %v447, %v446
    %v457 = vpack.c.b16 %v449, %v448
    %466 = vmatpush.bf16.msra.mxu0 %v457
    %467 = vmatpush.bf16.msra.mxu0 %v456
    %468 = vmatpush.bf16.msra.mxu0 %v455
    %469 = vmatpush.bf16.msra.mxu0 %v454
    %470 = vmatpush.bf16.msra.mxu0 %v453
    %471 = vmatpush.bf16.msra.mxu0 %v452
    %472 = vmatpush.bf16.msra.mxu0 %v451
    %473 = vmatpush.bf16.msra.mxu0 %v450
    %474 = vmatmul.bf16.gmra.mxu0 %v401
    %v475 = vpop.f32.mrf.mxu0
    %v476 = vadd.f32 0.0, %v475
    %v477 = vpop.f32.mrf.mxu0
    %478 = vdwg.mxu0
    %vm479 = vcmask 1043456
    %v480 = vsel %vm479, %v476, 0.0
    %v481 = vrot.slane %v480, 4
    %v482 = vadd.f32 %v480, %v481
    %v483 = vrot.slane %v482, 2
    %v484 = vadd.f32 %v482, %v483
    %v485 = vrot.slane %v484, 1
    %v486 = vadd.f32 %v484, %v485
    %v487 = vmul.f32 %v486, 0.25
    %v488 = vsub.f32 0.0, %v487
    %v489 = vmul.f32 %v488, 1.442695
    %v490 = vpow.pop %v489
    %v491 = vadd.f32 %v490, 1.0
    %v492 = vrcp.pop %v491
    %v493 = vmul.f32 %v491, %v492
    %v494 = vsub.f32 1.0, %v493
    %v495 = vmul.f32 %v492, %v494
    %v496 = vadd.f32 %v492, %v495
    %vm497 = vweird.f32 %v491
    %vm498 = vweird.f32 %v492
    %vm499 = vmor %vm497, %vm498
    %v500 = vsel %vm499, %v492, %v496
    %v501 = vand.u32 2147483647, %v491
    %vm502 = vcmp.eq.f32.partialorder %v501, 8.507059e+37
    %v503 = vand.u32 %v491, 2147483648
    %v504 = vor.u32 1.1754944e-38, %v503
    %v505 = vsel %vm502, %v504, %v500
    %v506 = vmul.f32 1.0, %v505
    %507 = vst [vmem:[#allocation2] sm:$0x1] %v506
    %v509 = vrot.slane %v476, 4
    %v511 = vsel %vm479, %v509, 0.0
    %v512 = vrot.slane %v511, 4
    %v513 = vadd.f32 %v511, %v512
    %v514 = vrot.slane %v513, 2
    %v515 = vadd.f32 %v513, %v514
    %v516 = vrot.slane %v515, 1
    %v517 = vadd.f32 %v515, %v516
    %v518 = vmul.f32 %v517, 0.25
    %v519 = vsub.f32 0.0, %v518
    %v520 = vmul.f32 %v519, 1.442695
    %v521 = vpow.pop %v520
    %v522 = vadd.f32 %v521, 1.0
    %v523 = vrcp.pop %v522
    %v524 = vmul.f32 %v522, %v523
    %v525 = vsub.f32 1.0, %v524
    %v526 = vmul.f32 %v523, %v525
    %v527 = vadd.f32 %v523, %v526
    %vm528 = vweird.f32 %v522
    %vm529 = vweird.f32 %v523
    %vm530 = vmor %vm528, %vm529
    %v531 = vsel %vm530, %v523, %v527
    %v532 = vand.u32 2147483647, %v522
    %vm533 = vcmp.eq.f32.partialorder %v532, 8.507059e+37
    %v534 = vand.u32 %v522, 2147483648
    %v535 = vor.u32 1.1754944e-38, %v534
    %v536 = vsel %vm533, %v535, %v531
    %v537 = vmul.f32 1.0, %v536
    %538 = vst [vmem:[#allocation2 + $0x1] sm:$0x1] %v537
    // Predicated region
    $region34: #{classification_forward.5} parent=1 // pred_check
      _
    $region35: #{classification_forward.5} parent=1 // pred_check_branch
      %540 = sbr.rel (0) target = $region37
    $region36: #{classification_forward.5} parent=1 // pred_region
      %542 = vsyncadd [#allocation3], 0
      %s544 = sshll.u32 [#allocation2], 4
      %s545 = int_to_ptr.vmem [resolvable:$true] %s544
      %s546 = sshll.u32 %s8, 4
      %s547 = int_to_ptr.hbm [resolvable:$true] %s546
      %549 = dma.vmem_to_hbm [thread:$0]  %s545, 32, %s547, [#allocation3]
    $region37: #{classification_forward.5} parent=1 // pred_fallthru
      _
    // Predicated region
    $region38: #{classification_forward.5} parent=1 // pred_check
      _
    $region39: #{classification_forward.5} parent=1 // pred_check_branch
      %551 = sbr.rel (0) target = $region41
    $region40: #{classification_forward.5} parent=1 // pred_region
      %553 = dma.done [#allocation3], 32
    $region41: #{classification_forward.5} parent=1 // pred_fallthru
      _
    %554 = vsyncpa [#allocation3], 1

</llo_original>
